<compile_context>
chip_gen: v5e
topology: v5e:2x2
jax: 0.10.0
libtpu: 0.0.40
codegen_flags: <defaults>
</compile_context>

<pallas_src>
import math
from functools import partial

import jax
import jax.numpy as jnp
from jax.experimental import pallas as pl
from jax.experimental.pallas import tpu as pltpu

LANE = 128   # vreg lane width (last dim)
SUB = 8      # vreg sublane width (second-to-last dim)


def _round_up(v, m):
    return ((v + m - 1) // m) * m


def _vmem_budget_bytes():
    """Per-generation scoped-VMEM budget: ~70% of physical capacity."""
    try:
        cap = int(pltpu.get_tpu_info().vmem_capacity_bytes)
    except Exception:
        cap = 64 * 1024 * 1024          # conservative (v7x-sized) fallback
    return (cap * 7) // 10


def _pick_row_tile(n, h_pad, c_pad, budget):
    """Largest adjacency row tile whose VMEM working set fits the budget."""
    n_min = _round_up(n, SUB)
    for cand in (1024, 512, 256, 128):
        if cand > n_min:
            continue
        n_pad = _round_up(n, cand)
        need = (2 * cand * n_pad * 2        # adj row tile, double-buffered, bf16
                + 2 * cand * c_pad * 4      # output tile, double-buffered, f32
                + 2 * n_pad * h_pad * 2     # resident support1 (default dbl-buf)
                + 2 * h_pad * c_pad * 2     # resident W2
                + 2 * (h_pad + c_pad) * 4   # biases
                + n_pad * c_pad * 2         # support2 scratch (bf16)
                + (4 << 20))                # headroom for internal scratch
        if need <= budget:
            return cand
    # For graphs so large that even a 128-row (tm, N) bf16 tile does not fit,
    # the K-tiling TODO above is required.
    return min(128, n_min)


# ----------------------------------------------------------------------------
# Fused kernel
# ----------------------------------------------------------------------------
def fused_gcn_kernel(adj_ref, s1_ref, b1_ref, w2_ref, b2_ref, o_ref, s2_ref,
                     *, row_tile, n_classes):
    phase = pl.program_id(0)   # 0: build support2 rows ; 1: layer-2 + log_softmax
    i = pl.program_id(1)       # adjacency row-tile index
    row0 = pl.multiple_of(i * row_tile, row_tile)

    # ---- phase 0: s2[tile] = relu(adj[tile,:] @ s1 + b1) @ W2 ----
    # (bf16 x bf16 MXU matmuls, f32 accumulation; s2 stored bf16)
    @pl.when(phase == 0)
    def _():
        hh = jnp.dot(adj_ref[...], s1_ref[...],
                     preferred_element_type=jnp.float32)
        hh = jnp.maximum(hh + b1_ref[...], 0.0)
        # TODO(synk): dropout(p=0.5) is identity in eval mode; training-mode
        # dropout would use pltpu.prng_seed / pltpu.prng_random_bits here.
        s2_ref[pl.ds(row0, row_tile), :] = jnp.dot(
            hh.astype(w2_ref.dtype), w2_ref[...],
            preferred_element_type=jnp.float32).astype(s2_ref.dtype)

    # ---- phase 1: logits[tile] = adj[tile,:] @ s2 + b2 ; row log_softmax ----
    @pl.when(phase == 1)
    def _():
        logits = jnp.dot(adj_ref[...], s2_ref[...],
                         preferred_element_type=jnp.float32) + b2_ref[...]
        # mask padded class lanes before the row reductions
        lane = jax.lax.broadcasted_iota(jnp.int32, logits.shape, 1)
        masked = jnp.where(lane < n_classes, logits, -1e30)
        m = jnp.max(masked, axis=1, keepdims=True)
        shifted = masked - m
        lse = jnp.log(jnp.sum(jnp.exp(shifted), axis=1, keepdims=True))
        o_ref[...] = (shifted - lse).astype(o_ref.dtype)


# ----------------------------------------------------------------------------
# Host wrapper: hoist x@W1 to XLA, pad to lane/sublane shapes, run fused
# kernel, slice padding off.
# ----------------------------------------------------------------------------
@partial(jax.jit, static_argnames=("row_tile",))
def gcn_forward(x, adj, w1, b1, w2, b2, *, row_tile=None):
    N = x.shape[0]
    h = w1.shape[1]
    c = w2.shape[1]

    h_pad = _round_up(h, LANE)
    c_pad = _round_up(c, LANE)

    budget = _vmem_budget_bytes()
    if row_tile is None:
        tm = _pick_row_tile(N, h_pad, c_pad, budget)
    else:
        tm = min(_round_up(row_tile, SUB), _round_up(N, SUB))
    n_pad = _round_up(N, tm)
    n_tiles = n_pad // tm

    bf = jnp.bfloat16
    f32 = jnp.float32

    # support1 = x @ W1 as a plain XLA matmul (N x nhid, tiny); keeps the big
    # (N x nfeat) feature matrix out of VMEM and removes the startup bubble.
    s1 = jnp.dot(x.astype(f32), w1.astype(f32), preferred_element_type=f32)

    # zero-pad (zero rows/cols contribute nothing); adj & matmul operands bf16
    adj_p = jnp.zeros((n_pad, n_pad), bf).at[:N, :N].set(adj.astype(bf))
    s1_p = jnp.zeros((n_pad, h_pad), bf).at[:N, :h].set(s1.astype(bf))
    b1_p = jnp.zeros((1, h_pad), f32).at[0, :h].set(b1.astype(f32))
    w2_p = jnp.zeros((h_pad, c_pad), bf).at[:h, :c].set(w2.astype(bf))
    b2_p = jnp.zeros((1, c_pad), f32).at[0, :c].set(b2.astype(f32))

    grid = (2, n_tiles)

    in_specs = [
        pl.BlockSpec((tm, n_pad), lambda p, i: (i, 0)),      # adj row tile (pipelined)
        pl.BlockSpec((n_pad, h_pad), lambda p, i: (0, 0)),   # support1 (resident)
        pl.BlockSpec((1, h_pad), lambda p, i: (0, 0)),       # b1       (resident)
        pl.BlockSpec((h_pad, c_pad), lambda p, i: (0, 0)),   # W2       (resident)
        pl.BlockSpec((1, c_pad), lambda p, i: (0, 0)),       # b2       (resident)
    ]
    # See module docstring for why (p*i, 0) never flushes the unwritten
    # phase-0 output buffer.
    out_specs = pl.BlockSpec((tm, c_pad), lambda p, i: (p * i, 0))

    scratch_shapes = [
        pltpu.VMEM((n_pad, c_pad), bf),   # support2 = h1 @ W2 (built per tile)
    ]

    # Advisory cost estimate for XLA scheduling.
    flops = 2 * (n_pad * n_pad * h_pad + n_pad * h_pad * c_pad
                 + n_pad * n_pad * c_pad)
    bytes_accessed = (2 * 2 * n_pad * n_pad          # adj read in both phases (bf16)
                      + 2 * n_pad * h_pad            # support1
                      + 2 * h_pad * c_pad            # W2
                      + 4 * (h_pad + c_pad)          # biases
                      + 4 * n_pad * c_pad)           # output
    cost = pl.CostEstimate(flops=int(flops),
                           transcendentals=int(2 * n_pad * c_pad),
                           bytes_accessed=int(bytes_accessed))

    cparams = pltpu.CompilerParams(
        # Row-tile axis writes/reads the shared s2 scratch (phase 1 reads ALL
        # rows), so neither axis can be sharded across TensorCores.
        dimension_semantics=("arbitrary", "arbitrary"),
        vmem_limit_bytes=int(budget),
    )

    out_pad = pl.pallas_call(
        partial(fused_gcn_kernel, row_tile=tm, n_classes=c),
        out_shape=jax.ShapeDtypeStruct((n_pad, c_pad), f32),
        grid_spec=pltpu.PrefetchScalarGridSpec(
            num_scalar_prefetch=0,
            grid=grid,
            in_specs=in_specs,
            out_specs=out_specs,
            scratch_shapes=scratch_shapes,
        ),
        compiler_params=cparams,
        cost_estimate=cost,
    )(adj_p, s1_p, b1_p, w2_p, b2_p)

    return out_pad[:N, :c]


# ----------------------------------------------------------------------------
# Main: tiny single-tile graph + multi-tile graph, checked against references.
# ----------------------------------------------------------------------------
if __name__ == "__main__":
    def init_params(key, nfeat, nhid, nclass):
        # matches GraphConvolution.reset_parameters (uniform(-stdv, stdv))
        k3, k4, k5, k6 = jax.random.split(key, 4)
        stdv1 = 1.0 / math.sqrt(nhid)
        w1 = jax.random.uniform(k3, (nfeat, nhid), jnp.float32, -stdv1, stdv1)
        b1 = jax.random.uniform(k4, (nhid,), jnp.float32, -stdv1, stdv1)
        stdv2 = 1.0 / math.sqrt(nclass)
        w2 = jax.random.uniform(k5, (nhid, nclass), jnp.float32, -stdv2, stdv2)
        b2 = jax.random.uniform(k6, (nclass,), jnp.float32, -stdv2, stdv2)
        return w1, b1, w2, b2

    def make_graph(key, n, nfeat, density=0.1):
        k1, k2 = jax.random.split(key)
        x = jax.random.normal(k1, (n, nfeat), dtype=jnp.float32)
        a = (jax.random.uniform(k2, (n, n)) < density).astype(jnp.float32)
        adj = a + a.T + jnp.eye(n, dtype=jnp.float32)      # symmetric + self-loops
        adj = adj / jnp.sum(adj, axis=1, keepdims=True)    # row-normalized
        return x, adj

    def ref_f32(x, adj, w1, b1, w2, b2):
        h1 = jnp.maximum(adj @ (x @ w1) + b1, 0.0)
        logits = adj @ (h1 @ w2) + b2
        return jax.nn.log_softmax(logits, axis=1)

    def ref_matched(x, adj, w1, b1, w2, b2):
        # mirrors the kernel's bf16 operand / f32 accumulation path
        bf, f32 = jnp.bfloat16, jnp.float32
        adj_b = adj.astype(bf)
        s1 = jnp.dot(x.astype(f32), w1.astype(f32),
                     preferred_element_type=f32).astype(bf)
        h1 = jnp.maximum(jnp.dot(adj_b, s1, preferred_element_type=f32) + b1, 0.0)
        s2 = jnp.dot(h1.astype(bf), w2.astype(bf),
                     preferred_element_type=f32).astype(bf)
        logits = jnp.dot(adj_b, s2, preferred_element_type=f32) + b2
        return jax.nn.log_softmax(logits, axis=1)

    key = jax.random.PRNGKey(0)
    kp, kg1, kg2 = jax.random.split(key, 3)

    nfeat, nhid, nclass = 16, 32, 8
    w1, b1, w2, b2 = init_params(kp, nfeat, nhid, nclass)

    # ---- test 1: tiny single-tile graph (auto row tile) ----
    x1, adj1 = make_graph(kg1, 8, nfeat, density=0.5)
    out1 = jax.block_until_ready(gcn_forward(x1, adj1, w1, b1, w2, b2))
    assert out1.shape == (8, nclass)
    assert jnp.allclose(out1, ref_matched(x1, adj1, w1, b1, w2, b2),
                        atol=5e-3, rtol=5e-3), "test1: mismatch vs bf16-matched ref"
    assert jnp.allclose(out1, ref_f32(x1, adj1, w1, b1, w2, b2),
                        atol=1e-1, rtol=5e-2), "test1: mismatch vs f32 ref"

    # ---- test 2: multi-tile graph (N >> row_tile) exercising the tiled s2
    # scratch writes, phase-boundary adj re-fetch and the output index trick.
    N2 = 640
    x2, adj2 = make_graph(kg2, N2, nfeat, density=0.05)
    out2 = jax.block_until_ready(
        gcn_forward(x2, adj2, w1, b1, w2, b2, row_tile=256))   # 3 row tiles
    assert out2.shape == (N2, nclass)
    assert jnp.allclose(out2, ref_matched(x2, adj2, w1, b1, w2, b2),
                        atol=5e-3, rtol=5e-3), "test2: mismatch vs bf16-matched ref"
    assert jnp.allclose(out2, ref_f32(x2, adj2, w1, b1, w2, b2),
                        atol=1e-1, rtol=5e-2), "test2: mismatch vs f32 ref"

    print("KERNEL_OK")
</pallas_src>

<mosaic_0001>
module attributes {stable_mosaic.version = 11 : i64} {
  func.func @fused_gcn_kernel(%arg0: i32, %arg1: i32, %arg2: memref<8x8xbf16, #tpu.memory_space<vmem>>, %arg3: memref<8x128xbf16, #tpu.memory_space<vmem>>, %arg4: memref<1x128xf32, #tpu.memory_space<vmem>>, %arg5: memref<128x128xbf16, #tpu.memory_space<vmem>>, %arg6: memref<1x128xf32, #tpu.memory_space<vmem>>, %arg7: memref<8x128xf32, #tpu.memory_space<vmem>>, %arg8: memref<8x128xbf16, #tpu.memory_space<vmem>>) attributes {dimension_semantics = [#tpu.dimension_semantics<arbitrary>, #tpu.dimension_semantics<arbitrary>], iteration_bounds = array<i64: 2, 1>, scalar_prefetch = 0 : i64, scratch_operands = 1 : i64, tpu.core_type = #tpu.core_type<tc>, window_params = [{transform_indices = @transform_0, window_bounds = array<i64: 8, 8>}, {pipeline_mode = #tpu.pipeline_mode<synchronous>, transform_indices = @transform_1, window_bounds = array<i64: 8, 128>}, {pipeline_mode = #tpu.pipeline_mode<synchronous>, transform_indices = @transform_2, window_bounds = array<i64: 1, 128>}, {pipeline_mode = #tpu.pipeline_mode<synchronous>, transform_indices = @transform_3, window_bounds = array<i64: 128, 128>}, {pipeline_mode = #tpu.pipeline_mode<synchronous>, transform_indices = @transform_4, window_bounds = array<i64: 1, 128>}, {transform_indices = @transform_5, window_bounds = array<i64: 8, 128>}]} {
    %c8_i32 = arith.constant 8 : i32
    %0 = arith.muli %arg1, %c8_i32 : i32
    %1 = tpu.assume_multiple %0, 8 : i32
    %c0_i32 = arith.constant 0 : i32
    %2 = arith.cmpi eq, %arg0, %c0_i32 : i32
    %3 = arith.extui %2 : i1 to i32
    %c0_i32_0 = arith.constant 0 : i32
    %4 = arith.cmpi ne, %3, %c0_i32_0 : i32
    scf.if %4 {
      %c0 = arith.constant 0 : index
      %c0_2 = arith.constant 0 : index
      %8 = vector.load %arg2[%c0, %c0_2] : memref<8x8xbf16, #tpu.memory_space<vmem>>, vector<8x8xbf16>
      %c0_3 = arith.constant 0 : index
      %c0_4 = arith.constant 0 : index
      %9 = vector.load %arg3[%c0_3, %c0_4] : memref<8x128xbf16, #tpu.memory_space<vmem>>, vector<8x128xbf16>
      %cst = arith.constant dense<0.000000e+00> : vector<8x128xf32>
      %10 = tpu.matmul %8, %9, %cst {dimension_numbers = #tpu.dot_dimension_numbers<[1], [0], [0], [1], [0, 0, 1, 1], [], []>} : vector<8x8xbf16>, vector<8x128xbf16>, vector<8x128xf32> -> vector<8x128xf32>
      %c0_5 = arith.constant 0 : index
      %c0_6 = arith.constant 0 : index
      %11 = vector.load %arg4[%c0_5, %c0_6] : memref<1x128xf32, #tpu.memory_space<vmem>>, vector<1x128xf32>
      %12 = vector.broadcast %11 : vector<1x128xf32> to vector<8x128xf32>
      %13 = arith.addf %10, %12 : vector<8x128xf32>
      %cst_7 = arith.constant 0.000000e+00 : f32
      %14 = vector.broadcast %cst_7 : f32 to vector<8x128xf32>
      %15 = arith.maximumf %13, %14 : vector<8x128xf32>
      %16 = arith.truncf %15 : vector<8x128xf32> to vector<8x128xbf16>
      %c0_8 = arith.constant 0 : index
      %c0_9 = arith.constant 0 : index
      %17 = vector.load %arg5[%c0_8, %c0_9] : memref<128x128xbf16, #tpu.memory_space<vmem>>, vector<128x128xbf16>
      %cst_10 = arith.constant dense<0.000000e+00> : vector<8x128xf32>
      %18 = tpu.matmul %16, %17, %cst_10 {dimension_numbers = #tpu.dot_dimension_numbers<[1], [0], [0], [1], [0, 0, 1, 1], [], []>} : vector<8x128xbf16>, vector<128x128xbf16>, vector<8x128xf32> -> vector<8x128xf32>
      %19 = arith.truncf %18 : vector<8x128xf32> to vector<8x128xbf16>
      %20 = arith.index_cast %1 : i32 to index
      %c0_11 = arith.constant 0 : index
      %21 = vector.load %arg8[%20, %c0_11] : memref<8x128xbf16, #tpu.memory_space<vmem>>, vector<8x128xbf16>
      tpu.vector_store %arg8[%20, %c0_11], %19 {strides = array<i32>} : memref<8x128xbf16, #tpu.memory_space<vmem>>, vector<8x128xbf16>,
    } else {
    }
    %c1_i32 = arith.constant 1 : i32
    %5 = arith.cmpi eq, %arg0, %c1_i32 : i32
    %6 = arith.extui %5 : i1 to i32
    %c0_i32_1 = arith.constant 0 : i32
    %7 = arith.cmpi ne, %6, %c0_i32_1 : i32
    scf.if %7 {
      %c0 = arith.constant 0 : index
      %c0_2 = arith.constant 0 : index
      %8 = vector.load %arg2[%c0, %c0_2] : memref<8x8xbf16, #tpu.memory_space<vmem>>, vector<8x8xbf16>
      %c0_3 = arith.constant 0 : index
      %c0_4 = arith.constant 0 : index
      %9 = vector.load %arg8[%c0_3, %c0_4] : memref<8x128xbf16, #tpu.memory_space<vmem>>, vector<8x128xbf16>
      %cst = arith.constant dense<0.000000e+00> : vector<8x128xf32>
      %10 = tpu.matmul %8, %9, %cst {dimension_numbers = #tpu.dot_dimension_numbers<[1], [0], [0], [1], [0, 0, 1, 1], [], []>} : vector<8x8xbf16>, vector<8x128xbf16>, vector<8x128xf32> -> vector<8x128xf32>
      %c0_5 = arith.constant 0 : index
      %c0_6 = arith.constant 0 : index
      %11 = vector.load %arg6[%c0_5, %c0_6] : memref<1x128xf32, #tpu.memory_space<vmem>>, vector<1x128xf32>
      %12 = vector.broadcast %11 : vector<1x128xf32> to vector<8x128xf32>
      %13 = arith.addf %10, %12 : vector<8x128xf32>
      %14 = tpu.iota {dimensions = array<i32: 1>} : vector<8x128xi32>
      %c8_i32_7 = arith.constant 8 : i32
      %15 = vector.broadcast %c8_i32_7 : i32 to vector<8x128xi32>
      %16 = arith.cmpi slt, %14, %15 : vector<8x128xi32>
      %cst_8 = arith.constant -1.000000e+30 : f32
      %17 = vector.broadcast %cst_8 : f32 to vector<8x128xf32>
      %18 = arith.select %16, %13, %17 : vector<8x128xi1>, vector<8x128xf32>
      %cst_9 = arith.constant dense<0xFF800000> : vector<8xf32>
      %19 = vector.multi_reduction <maximumf>, %18, %cst_9 [1] : vector<8x128xf32> to vector<8xf32>
      %20 = vector.shape_cast %19 : vector<8xf32> to vector<8x1xf32>
      %21 = vector.broadcast %20 : vector<8x1xf32> to vector<8x128xf32>
      %22 = arith.subf %18, %21 : vector<8x128xf32>
      %23 = math.exp %22 : vector<8x128xf32>
      %cst_10 = arith.constant dense<0.000000e+00> : vector<8xf32>
      %24 = vector.multi_reduction <add>, %23, %cst_10 [1] : vector<8x128xf32> to vector<8xf32>
      %25 = vector.shape_cast %24 : vector<8xf32> to vector<8x1xf32>
      %26 = math.log %25 : vector<8x1xf32>
      %27 = vector.broadcast %26 : vector<8x1xf32> to vector<8x128xf32>
      %28 = arith.subf %22, %27 : vector<8x128xf32>
      %c0_11 = arith.constant 0 : index
      %c0_12 = arith.constant 0 : index
      %29 = vector.load %arg7[%c0_11, %c0_12] : memref<8x128xf32, #tpu.memory_space<vmem>>, vector<8x128xf32>
      tpu.vector_store %arg7[%c0_11, %c0_12], %28 {strides = array<i32>} : memref<8x128xf32, #tpu.memory_space<vmem>>, vector<8x128xf32>,
    } else {
    }
    return
  }
  func.func @transform_0(%arg0: i32, %arg1: i32) -> (i32, i32) {
    %c0_i32 = arith.constant 0 : i32
    %c0_i32_0 = arith.constant 0 : i32
    return %arg1, %c0_i32 : i32, i32
  }
  func.func @transform_1(%arg0: i32, %arg1: i32) -> (i32, i32) {
    %c0_i32 = arith.constant 0 : i32
    %c0_i32_0 = arith.constant 0 : i32
    %c0_i32_1 = arith.constant 0 : i32
    return %c0_i32, %c0_i32_0 : i32, i32
  }
  func.func @transform_2(%arg0: i32, %arg1: i32) -> (i32, i32) {
    %c0_i32 = arith.constant 0 : i32
    %c0_i32_0 = arith.constant 0 : i32
    %c0_i32_1 = arith.constant 0 : i32
    return %c0_i32, %c0_i32_0 : i32, i32
  }
  func.func @transform_3(%arg0: i32, %arg1: i32) -> (i32, i32) {
    %c0_i32 = arith.constant 0 : i32
    %c0_i32_0 = arith.constant 0 : i32
    %c0_i32_1 = arith.constant 0 : i32
    return %c0_i32, %c0_i32_0 : i32, i32
  }
  func.func @transform_4(%arg0: i32, %arg1: i32) -> (i32, i32) {
    %c0_i32 = arith.constant 0 : i32
    %c0_i32_0 = arith.constant 0 : i32
    %c0_i32_1 = arith.constant 0 : i32
    return %c0_i32, %c0_i32_0 : i32, i32
  }
  func.func @transform_5(%arg0: i32, %arg1: i32) -> (i32, i32) {
    %0 = arith.muli %arg0, %arg1 : i32
    %c0_i32 = arith.constant 0 : i32
    %c0_i32_0 = arith.constant 0 : i32
    return %0, %c0_i32 : i32, i32
  }
}

</mosaic_0001>

<llo_original>
// kernel: gcn_forward.1
$region0: #{gcn_forward.1}
  #allocation0 [shape = 'u32[]', space=smem, size = 0x4, offset = 0x4, fixed_abs, tag = 'smem constant byte address 0x4 - core index']
  #allocation1 [shape = 'u32[72,128]{1,0:T(1,128)}', space=vmem, size = 0x9000, scoped, tag = 'internal scratch']
  #allocation2 [shape = 'bf16[8,128]{1,0:T(8,128)(2,1)}', space=vmem, size = 0x800, scoped, tag = 'scratch operand']
  %s0 = inlined_call_operand.vmem [shape: bf16[8,8], index: 0, kind: input, shape index: {}]
  %s1 = inlined_call_operand.vmem [shape: bf16[8,128], index: 1, kind: input, shape index: {}]
  %s2 = inlined_call_operand.vmem [shape: f32[1,128], index: 2, kind: input, shape index: {}]
  %s3 = inlined_call_operand.vmem [shape: bf16[128,128], index: 3, kind: input, shape index: {}]
  %s4 = inlined_call_operand.vmem [shape: f32[1,128], index: 4, kind: input, shape index: {}]
  %s5 = inlined_call_operand.hbm [shape: f32[8,128], index: 5, kind: output, shape index: {}]
  %s6 = sld [smem:[#allocation0]]
  $region61: #{gcn_forward.1} parent=0
    _
  %s8 = ssub.s32 1, %s6
  %s9 = scalar_select 0, %s8, %s6
  $region1: #{gcn_forward.1} parent=0
    #allocation3 [shape = 'u8[8192]{0}', space=vmem, size = 0x2000, scoped, tag = 'output window, operand 0']
    #allocation4 [shape = 's32[2]{0}', space=sflag, size = 0x8, scoped, tag = 'scoped memory for gcn_forward.1']
    %10 = vsyncpa [#allocation4], 0
    %s11 = scalar_lea.sflag [#allocation4], 1
    %12 = vsyncpa %s11, 0
    loop: start=0, step=1, limit=4
    $region2: #{gcn_forward.1} parent=1 // loop_pre_header
      _
    $region3: #{gcn_forward.1} parent=1 // loop_header
      %s14 = sphi 0, %s18
      %p15 = scmp.ge.s32.totalorder %s14, 4
      %s21 = sphi 0, %s33
      %s22 = sphi 0, %s29
      %s23 = sphi 0, %s21
      %s24 = sphi 0, %s22
      %s25 = sphi 0, %s23
      %s26 = sphi 0, %s24
      %s36 = sphi 0, %s38
      %s39 = sphi 0, %s36
      %s40 = sphi 0, %s39
      %s56 = sphi 0, %s40
      %s60 = sphi 0, %s60
      %s62 = sphi 0, %s60
      %s63 = sphi 0, %s62
      %s77 = sphi 0, %s63
      %s81 = sphi 0, %s81
      %s83 = sphi 0, %s81
      %s84 = sphi 0, %s83
      %s98 = sphi 0, %s84
      %s102 = sphi 0, %s102
      %s104 = sphi 0, %s102
      %s105 = sphi 0, %s104
      %s119 = sphi 0, %s105
      %s123 = sphi 0, %s123
      %s125 = sphi 0, %s123
      %s126 = sphi 0, %s125
      %s140 = sphi 0, %s126
      %s148 = sphi 0, %s150
      %s151 = sphi 0, %s148
      %s152 = sphi 0, %s151
      %s168 = sphi 0, %s152
    $region4: #{gcn_forward.1} parent=1 // loop_header_branch
      %17 = sbr.rel (%p15) target = $region8
    $region5: #{gcn_forward.1} parent=1 // loop_body
      %s19 = ssub.s32 %s14, 1
      %s20 = ssub.s32 %s14, 2
      %s27 = sadd.s32 1, %s22
      %p28 = scmp.ge.s32.totalorder %s27, 1
      %s29 = scalar_select %p28, 0, %s27
      %s30 = sadd.s32 1, %s21
      %s31 = scalar_select %p28, %s30, %s21
      %p32 = scmp.ge.s32.totalorder %s31, 2
      %s33 = scalar_select %p32, 0, %s31
      %s34 = ssub.s32 %s22, %s29
      %p35 = scmp.eq.s32.totalorder %s34, 0
      %s37 = sadd.s32 %s36, 1
      %s38 = scalar_select %p35, %s36, %s37
      %p41 = pneg %p35
      %p42 = scmp.eq.s32.totalorder %s14, 1
      %p43 = por %p41, %p42
      %p44 = scmp.ne.s32.totalorder %s36, %s39
      %p45 = scmp.eq.s32.totalorder %s14, 0
      %p46 = por %p44, %p45
      %p47 = scmp.ne.s32.totalorder %s36, %s39
      %p48 = scmp.eq.s32.totalorder %s19, 1
      %p49 = por %p47, %p48
      %p50 = scmp.ne.s32.totalorder %s39, %s40
      %p51 = scmp.eq.s32.totalorder %s19, 0
      %p52 = por %p50, %p51
      %p53 = scmp.ne.s32.totalorder %s39, %s40
      %p54 = scmp.eq.s32.totalorder %s20, 1
      %p55 = por %p53, %p54
      %p57 = scmp.ne.s32.totalorder %s40, %s56
      %p58 = scmp.eq.s32.totalorder %s20, 0
      %p59 = por %p57, %p58
      %s61 = sadd.s32 %s60, 1
      %p64 = scmp.eq.s32.totalorder %s14, 1
      %p65 = scmp.ne.s32.totalorder %s60, %s62
      %p66 = scmp.eq.s32.totalorder %s14, 0
      %p67 = por %p65, %p66
      %p68 = scmp.ne.s32.totalorder %s60, %s62
      %p69 = scmp.eq.s32.totalorder %s19, 1
      %p70 = por %p68, %p69
      %p71 = scmp.ne.s32.totalorder %s62, %s63
      %p72 = scmp.eq.s32.totalorder %s19, 0
      %p73 = por %p71, %p72
      %p74 = scmp.ne.s32.totalorder %s62, %s63
      %p75 = scmp.eq.s32.totalorder %s20, 1
      %p76 = por %p74, %p75
      %p78 = scmp.ne.s32.totalorder %s63, %s77
      %p79 = scmp.eq.s32.totalorder %s20, 0
      %p80 = por %p78, %p79
      %s82 = sadd.s32 %s81, 1
      %p85 = scmp.eq.s32.totalorder %s14, 1
      %p86 = scmp.ne.s32.totalorder %s81, %s83
      %p87 = scmp.eq.s32.totalorder %s14, 0
      %p88 = por %p86, %p87
      %p89 = scmp.ne.s32.totalorder %s81, %s83
      %p90 = scmp.eq.s32.totalorder %s19, 1
      %p91 = por %p89, %p90
      %p92 = scmp.ne.s32.totalorder %s83, %s84
      %p93 = scmp.eq.s32.totalorder %s19, 0
      %p94 = por %p92, %p93
      %p95 = scmp.ne.s32.totalorder %s83, %s84
      %p96 = scmp.eq.s32.totalorder %s20, 1
      %p97 = por %p95, %p96
      %p99 = scmp.ne.s32.totalorder %s84, %s98
      %p100 = scmp.eq.s32.totalorder %s20, 0
      %p101 = por %p99, %p100
      %s103 = sadd.s32 %s102, 1
      %p106 = scmp.eq.s32.totalorder %s14, 1
      %p107 = scmp.ne.s32.totalorder %s102, %s104
      %p108 = scmp.eq.s32.totalorder %s14, 0
      %p109 = por %p107, %p108
      %p110 = scmp.ne.s32.totalorder %s102, %s104
      %p111 = scmp.eq.s32.totalorder %s19, 1
      %p112 = por %p110, %p111
      %p113 = scmp.ne.s32.totalorder %s104, %s105
      %p114 = scmp.eq.s32.totalorder %s19, 0
      %p115 = por %p113, %p114
      %p116 = scmp.ne.s32.totalorder %s104, %s105
      %p117 = scmp.eq.s32.totalorder %s20, 1
      %p118 = por %p116, %p117
      %p120 = scmp.ne.s32.totalorder %s105, %s119
      %p121 = scmp.eq.s32.totalorder %s20, 0
      %p122 = por %p120, %p121
      %s124 = sadd.s32 %s123, 1
      %p127 = scmp.eq.s32.totalorder %s14, 1
      %p128 = scmp.ne.s32.totalorder %s123, %s125
      %p129 = scmp.eq.s32.totalorder %s14, 0
      %p130 = por %p128, %p129
      %p131 = scmp.ne.s32.totalorder %s123, %s125
      %p132 = scmp.eq.s32.totalorder %s19, 1
      %p133 = por %p131, %p132
      %p134 = scmp.ne.s32.totalorder %s125, %s126
      %p135 = scmp.eq.s32.totalorder %s19, 0
      %p136 = por %p134, %p135
      %p137 = scmp.ne.s32.totalorder %s125, %s126
      %p138 = scmp.eq.s32.totalorder %s20, 1
      %p139 = por %p137, %p138
      %p141 = scmp.ne.s32.totalorder %s126, %s140
      %p142 = scmp.eq.s32.totalorder %s20, 0
      %p143 = por %p141, %p142
      %s144 = smul.u32 %s21, %s22
      %s145 = smul.u32 %s33, %s29
      %s146 = ssub.s32 %s144, %s145
      %p147 = scmp.eq.s32.totalorder %s146, 0
      %s149 = sadd.s32 %s148, 1
      %s150 = scalar_select %p147, %s148, %s149
      %p153 = pneg %p147
      %p154 = scmp.eq.s32.totalorder %s14, 1
      %p155 = por %p153, %p154
      %p156 = scmp.ne.s32.totalorder %s148, %s151
      %p157 = scmp.eq.s32.totalorder %s14, 0
      %p158 = por %p156, %p157
      %p159 = scmp.ne.s32.totalorder %s148, %s151
      %p160 = scmp.eq.s32.totalorder %s19, 1
      %p161 = por %p159, %p160
      %p162 = scmp.ne.s32.totalorder %s151, %s152
      %p163 = scmp.eq.s32.totalorder %s19, 0
      %p164 = por %p162, %p163
      %p165 = scmp.ne.s32.totalorder %s151, %s152
      %p166 = scmp.eq.s32.totalorder %s20, 1
      %p167 = por %p165, %p166
      %p169 = scmp.ne.s32.totalorder %s152, %s168
      %p170 = scmp.eq.s32.totalorder %s20, 0
      %p171 = por %p169, %p170
      %p172 = scmp.le.s32.totalorder 1, %s14
      %p173 = scmp.lt.s32.totalorder %s14, 3
      %p174 = pnand %p172, %p173
      %p175 = pneg %p174
      // Predicated region
      $region9: #{gcn_forward.1} parent=5 // pred_check
        _
      $region10: #{gcn_forward.1} parent=5 // pred_check_branch
        %177 = sbr.rel (%p174) target = $region12
      $region11: #{gcn_forward.1} parent=5 // pred_region
        %s178 = ssub.s32 %s14, 1
        // Predicated region
        $region13: #{gcn_forward.1} parent=11 // pred_check
          %p179 = pneg %p52
        $region14: #{gcn_forward.1} parent=11 // pred_check_branch
          %181 = sbr.rel (%p179) target = $region16
        $region15: #{gcn_forward.1} parent=11 // pred_region
          %p182 = scmp.lt.s32.totalorder %s24, 0
          %s183 = scalar_select %p182, %s24, 0
          %s184 = smul.addr %s183, 4
          %s185 = scalar_lea.vmem %s0, %s184
        $region16: #{gcn_forward.1} parent=11 // pred_fallthru
          _
        // Predicated region
        $region17: #{gcn_forward.1} parent=11 // pred_check
          %p186 = pneg %p73
        $region18: #{gcn_forward.1} parent=11 // pred_check_branch
          %188 = sbr.rel (%p186) target = $region20
        $region19: #{gcn_forward.1} parent=11 // pred_region
          _
        $region20: #{gcn_forward.1} parent=11 // pred_fallthru
          _
        // Predicated region
        $region21: #{gcn_forward.1} parent=11 // pred_check
          %p189 = pneg %p94
        $region22: #{gcn_forward.1} parent=11 // pred_check_branch
          %191 = sbr.rel (%p189) target = $region24
        $region23: #{gcn_forward.1} parent=11 // pred_region
          _
        $region24: #{gcn_forward.1} parent=11 // pred_fallthru
          _
        // Predicated region
        $region25: #{gcn_forward.1} parent=11 // pred_check
          %p192 = pneg %p115
        $region26: #{gcn_forward.1} parent=11 // pred_check_branch
          %194 = sbr.rel (%p192) target = $region28
        $region27: #{gcn_forward.1} parent=11 // pred_region
          _
        $region28: #{gcn_forward.1} parent=11 // pred_fallthru
          _
        // Predicated region
        $region29: #{gcn_forward.1} parent=11 // pred_check
          %p195 = pneg %p136
        $region30: #{gcn_forward.1} parent=11 // pred_check_branch
          %197 = sbr.rel (%p195) target = $region32
        $region31: #{gcn_forward.1} parent=11 // pred_region
          _
        $region32: #{gcn_forward.1} parent=11 // pred_fallthru
          _
      $region12: #{gcn_forward.1} parent=5 // pred_fallthru
        _
      %p198 = scmp.lt.s32.totalorder %s14, 2
      // Predicated region
      $region33: #{gcn_forward.1} parent=5 // pred_check
        %p199 = pneg %p198
      $region34: #{gcn_forward.1} parent=5 // pred_check_branch
        %201 = sbr.rel (%p199) target = $region36
      $region35: #{gcn_forward.1} parent=5 // pred_region
        _
      $region36: #{gcn_forward.1} parent=5 // pred_fallthru
        _
      %p202 = scmp.le.s32.totalorder 1, %s14
      %p203 = scmp.lt.s32.totalorder %s14, 3
      %p204 = pnand %p202, %p203
      %p205 = pneg %p204
      // Predicated region
      $region37: #{gcn_forward.1} parent=5 // pred_check
        _
      $region38: #{gcn_forward.1} parent=5 // pred_check_branch
        %207 = sbr.rel (%p204) target = $region40
      $region39: #{gcn_forward.1} parent=5 // pred_region
        %s208 = ssub.s32 %s14, 1
        %p209 = scmp.lt.s32.totalorder %s24, 0
        %s210 = scalar_select %p209, %s24, 0
        %s211 = smul.addr %s210, 4
        %s212 = scalar_lea.vmem %s0, %s211
        %p213 = pneg %p52
        %p214 = pneg %p49
        %p215 = pneg %p73
        %p216 = pneg %p70
        %p217 = pneg %p94
        %p218 = pneg %p91
        %p219 = pneg %p115
        %p220 = pneg %p112
        %p221 = pneg %p136
        %p222 = pneg %p133
        %p223 = pneg %p164
        %p224 = pneg %p161
        %s225 = sand.u32 %s151, 1
        %s226 = scalar_lea.sflag [#allocation4], %s225
        %s227 = sand.u32 %s151, 1
        %s228 = smul.addr %s227, 8
        %s229 = scalar_lea.vmem [#allocation3], %s228
        %p230 = scmp.lt.s32.totalorder %s24, 0
        %s231 = scalar_select %p230, %s24, 0
        %s232 = smul.addr %s231, 4
        %s233 = scalar_lea.vmem %s0, %s232
        %s234 = smul.u32 %s23, %s24
        %s236 = smul.u32 %s24, 8
        %p237 = scmp.eq.s32.totalorder %s23, 0
        // Predicated region
        $region41: #{gcn_forward.1} parent=39 // pred_check
          %p238 = pneg %p237
        $region42: #{gcn_forward.1} parent=39 // pred_check_branch
          %240 = sbr.rel (%p238) target = $region44
        $region43: #{gcn_forward.1} parent=39 // pred_region
          %v241 = vld [vmem:[%s233] sm:$0xf]
          %v242 = vld [vmem:[%s1] sm:$0xf]
          %v243 = vld [vmem:[%s2] sm:$0x1]
          %v245 = vperm.slane %v243, 0
          %vm247 = vcmask 64512
          %v249 = vsel %vm247, %v241, 0
          %vm251 = vcmask 1043456
          %v253 = vsel %vm251, %v242, 0
          %255 = vmatpush.bf16.msra.mxu0 0
          %256 = vmatpush.bf16.msra.mxu0 0
          %257 = vmatpush.bf16.msra.mxu0 0
          %258 = vmatpush.bf16.msra.mxu0 0
          %259 = vmatpush.bf16.msra.mxu0 0
          %260 = vmatpush.bf16.msra.mxu0 0
          %261 = vmatpush.bf16.msra.mxu0 0
          %262 = vmatpush.bf16.msra.mxu0 %v253
          %263 = vmatmul.bf16.gmra.mxu0 %v249
          %v264 = vpop.f32.mrf.mxu0
          %v265 = vadd.f32 %v245, %v264
          %v266 = vpop.f32.mrf.mxu0
          %267 = vdwg.mxu0
          %v268 = vmax.f32 %v265, 0.0
          %v269 = vpack.c.bf16 %v268, %v268
          %v270 = vld [vmem:[%s3] sm:$0xf]
          %v271 = vld [vmem:[%s3 + $0x4] sm:$0xf]
          %v272 = vld [vmem:[%s3 + $0x8] sm:$0xf]
          %v273 = vld [vmem:[%s3 + $0xc] sm:$0xf]
          %v274 = vld [vmem:[%s3 + $0x10] sm:$0xf]
          %v275 = vld [vmem:[%s3 + $0x14] sm:$0xf]
          %v276 = vld [vmem:[%s3 + $0x18] sm:$0xf]
          %v277 = vld [vmem:[%s3 + $0x1c] sm:$0xf]
          %v278 = vld [vmem:[%s3 + $0x20] sm:$0xf]
          %v279 = vld [vmem:[%s3 + $0x24] sm:$0xf]
          %v280 = vld [vmem:[%s3 + $0x28] sm:$0xf]
          %v281 = vld [vmem:[%s3 + $0x2c] sm:$0xf]
          %v282 = vld [vmem:[%s3 + $0x30] sm:$0xf]
          %v283 = vld [vmem:[%s3 + $0x34] sm:$0xf]
          %v284 = vld [vmem:[%s3 + $0x38] sm:$0xf]
          %v285 = vld [vmem:[%s3 + $0x3c] sm:$0xf]
          %v302 = vunpack.c.l.b16 %v270
          %v303 = vunpack.c.l.b16 %v271
          %v304 = vunpack.c.l.b16 %v272
          %v305 = vunpack.c.l.b16 %v273
          %v306 = vunpack.c.l.b16 %v274
          %v307 = vunpack.c.l.b16 %v275
          %v308 = vunpack.c.l.b16 %v276
          %v309 = vunpack.c.l.b16 %v277
          %v310 = vunpack.c.l.b16 %v278
          %v311 = vunpack.c.l.b16 %v279
          %v312 = vunpack.c.l.b16 %v280
          %v313 = vunpack.c.l.b16 %v281
          %v314 = vunpack.c.l.b16 %v282
          %v315 = vunpack.c.l.b16 %v283
          %v316 = vunpack.c.l.b16 %v284
          %v317 = vunpack.c.l.b16 %v285
          %v318 = vpack.c.b16 %v303, %v302
          %v319 = vpack.c.b16 %v305, %v304
          %v320 = vpack.c.b16 %v307, %v306
          %v321 = vpack.c.b16 %v309, %v308
          %v322 = vpack.c.b16 %v311, %v310
          %v323 = vpack.c.b16 %v313, %v312
          %v324 = vpack.c.b16 %v315, %v314
          %v325 = vpack.c.b16 %v317, %v316
          %334 = vmatpush.bf16.msra.mxu0 %v325
          %335 = vmatpush.bf16.msra.mxu0 %v324
          %336 = vmatpush.bf16.msra.mxu0 %v323
          %337 = vmatpush.bf16.msra.mxu0 %v322
          %338 = vmatpush.bf16.msra.mxu0 %v321
          %339 = vmatpush.bf16.msra.mxu0 %v320
          %340 = vmatpush.bf16.msra.mxu0 %v319
          %341 = vmatpush.bf16.msra.mxu0 %v318
          %342 = vmatmul.bf16.gmra.mxu0 %v269
          %v343 = vpop.f32.mrf.mxu0
          %v344 = vadd.f32 0.0, %v343
          %v345 = vpop.f32.mrf.mxu0
          %346 = vdwg.mxu0
          %v347 = vpack.c.bf16 %v344, %v344
          %s348 = sshra.s32 %s236, 3
          %s349 = sand.u32 %s236, 7
          %s350 = smul.addr %s348, 4
          %s351 = scalar_lea.vmem [#allocation2], %s350
          %352 = vst [vmem:[%s351] sm:$0xf] %v347
        $region44: #{gcn_forward.1} parent=39 // pred_fallthru
          _
        %p353 = scmp.eq.s32.totalorder %s23, 1
        // Predicated region
        $region45: #{gcn_forward.1} parent=39 // pred_check
          %p354 = pneg %p353
        $region46: #{gcn_forward.1} parent=39 // pred_check_branch
          %356 = sbr.rel (%p354) target = $region48
        $region47: #{gcn_forward.1} parent=39 // pred_region
          %v357 = vld [vmem:[%s233] sm:$0xf]
          %v358 = vld [vmem:[#allocation2] sm:$0xf]
          %v359 = vld [vmem:[%s4] sm:$0x1]
          %v361 = vperm.slane %v359, 0
          %vm363 = vcmask 64512
          %v365 = vsel %vm363, %v357, 0
          %vm367 = vcmask 1043456
          %v369 = vsel %vm367, %v358, 0
          %371 = vmatpush.bf16.msra.mxu0 0
          %372 = vmatpush.bf16.msra.mxu0 0
          %373 = vmatpush.bf16.msra.mxu0 0
          %374 = vmatpush.bf16.msra.mxu0 0
          %375 = vmatpush.bf16.msra.mxu0 0
          %376 = vmatpush.bf16.msra.mxu0 0
          %377 = vmatpush.bf16.msra.mxu0 0
          %378 = vmatpush.bf16.msra.mxu0 %v369
          %379 = vmatmul.bf16.gmra.mxu0 %v365
          %v380 = vpop.f32.mrf.mxu0
          %v381 = vadd.f32 %v361, %v380
          %v382 = vpop.f32.mrf.mxu0
          %383 = vdwg.mxu0
          %v384 = vlaneseq
          %v385 = vand.u32 %v384, 127
          %vm386 = vcmp.lt.s32.totalorder %v385, 8
          %v387 = vsel %vm386, %v381, -1e+30
          %388 = vmax.xlane.f32.xlu0 %v387
          %v389 = vpop.xlane.xlu0 %388
          %v390 = vsub.f32 %v387, %v389
          %v391 = vmul.f32 %v390, 1.442695
          %v392 = vpow.pop %v391
          %393 = vadd.xlane.f32.xlu0 %v392
          %v394 = vpop.xlane.xlu0 %393
          %v395 = vlog2.pop %v394
          %v396 = vmul.f32 %v395, 0.6931472
          %v397 = vsub.f32 %v390, %v396
          %398 = vst [vmem:[%s229] sm:$0xff] %v397
        $region48: #{gcn_forward.1} parent=39 // pred_fallthru
          _
        %s399 = sand.u32 %s151, 1
        %s400 = scalar_lea.sflag [#allocation4], %s399
        %s401 = sand.u32 %s151, 1
        %s402 = smul.addr %s401, 8
        %s403 = scalar_lea.vmem [#allocation3], %s402
        // Predicated region
        $region49: #{gcn_forward.1} parent=39 // pred_check
          %p404 = pneg %p161
        $region50: #{gcn_forward.1} parent=39 // pred_check_branch
          %406 = sbr.rel (%p404) target = $region52
        $region51: #{gcn_forward.1} parent=39 // pred_region
          %s407 = smul.u32 %s23, %s24
          %409 = vsyncadd %s400, 0
          %s410 = smul.addr %s407, 8
          %s411 = scalar_lea.hbm %s5, %s410
          %s413 = sshll.u32 %s403, 4
          %s414 = int_to_ptr.vmem [resolvable:$true] %s413
          %s415 = sshll.u32 %s411, 4
          %s416 = int_to_ptr.hbm [resolvable:$true] %s415
          %418 = dma.vmem_to_hbm [thread:$0]  %s414, 128, %s416, %s400
        $region52: #{gcn_forward.1} parent=39 // pred_fallthru
          _
      $region40: #{gcn_forward.1} parent=5 // pred_fallthru
        _
      %p419 = scmp.le.s32.totalorder 2, %s14
      // Predicated region
      $region53: #{gcn_forward.1} parent=5 // pred_check
        %p420 = pneg %p419
      $region54: #{gcn_forward.1} parent=5 // pred_check_branch
        %422 = sbr.rel (%p420) target = $region56
      $region55: #{gcn_forward.1} parent=5 // pred_region
        %s423 = ssub.s32 %s14, 2
        // Predicated region
        $region57: #{gcn_forward.1} parent=55 // pred_check
          %p424 = pneg %p167
        $region58: #{gcn_forward.1} parent=55 // pred_check_branch
          %426 = sbr.rel (%p424) target = $region60
        $region59: #{gcn_forward.1} parent=55 // pred_region
          %s427 = sand.u32 %s152, 1
          %s428 = scalar_lea.sflag [#allocation4], %s427
          %s429 = sand.u32 %s152, 1
          %s430 = smul.addr %s429, 8
          %s431 = scalar_lea.vmem [#allocation3], %s430
          %433 = dma.done %s428, 128
        $region60: #{gcn_forward.1} parent=55 // pred_fallthru
          _
      $region56: #{gcn_forward.1} parent=5 // pred_fallthru
        _
    $region6: #{gcn_forward.1} parent=1 // loop_footer
      %s18 = sadd.s32 1, %s14
    $region7: #{gcn_forward.1} parent=1 // loop_footer_branch
      %13 = sbr.rel target = $region3
    $region8: #{gcn_forward.1} parent=1 // loop_exit
      _
    %434 = vsyncpa [#allocation4], 1
    %s435 = scalar_lea.sflag [#allocation4], 1
    %436 = vsyncpa %s435, 1

</llo_original>
